<compile_context>
chip_gen: v7x
topology: tpu7x:2x2x1
jax: 0.10.0
libtpu: 0.0.40
codegen_flags: <defaults>
</compile_context>

<pallas_src>
import numpy as np
import jax
import jax.numpy as jnp
from jax.experimental import pallas as pl
from jax.experimental.pallas import tpu as pltpu

N_POINTS = 64   # number of 3D points in the cloud
LATENT = 32     # latent code size


# ---------------------------------------------------------------------------
# Fused kernel: decoder fwd -> Asap energy + analytic grad -> decoder bwd
# ---------------------------------------------------------------------------
def _fused_kernel(w_ref, code_ref, wc_ref, wct_ref, b_ref, d1_ref, s_ref,
                  e_ref, gcode_ref, x2_ref):
    w = w_ref[0, 0]
    code = code_ref[...]                                            # (1, L)

    # --- decoder forward: reconstruction in planar (3, N) layout (rows = x/y/z) ---
    for c in range(3):                                              # 3 tiny MXU matmuls
        x2_ref[pl.ds(c, 1), :] = jnp.dot(
            code, wc_ref[c], preferred_element_type=jnp.float32)    # (1, N)
    x2 = x2_ref[...] + b_ref[...]                                   # (3, N)

    # --- pairwise distances of the reconstruction via the Gram identity (lane-dense) ---
    row_i = jax.lax.broadcasted_iota(jnp.int32, (N_POINTS, N_POINTS), 0)
    col_i = jax.lax.broadcasted_iota(jnp.int32, (N_POINTS, N_POINTS), 1)
    eye = (row_i == col_i).astype(jnp.float32)

    gram = jax.lax.dot_general(x2, x2, (((0,), (0,)), ((), ())),
                               preferred_element_type=jnp.float32)  # (N, N) = X^T X
    sq_row = jnp.sum(x2 * x2, axis=0, keepdims=True)                # (1, N)
    sq_col = jnp.sum(gram * eye, axis=1, keepdims=True)             # (N, 1) diag(gram)
    d2sq = jnp.maximum(sq_col + sq_row - 2.0 * gram, 0.0)           # (N, N)
    inv_d2 = jax.lax.rsqrt(d2sq + eye)                              # EUP; diag stays finite
    d2 = d2sq * inv_d2                                              # sqrt off-diag, 0 on diag

    diff = d1_ref[...] - d2                                         # (N, N)
    sdiff = s_ref[...] * diff                                       # S = M + M^T, zero diagonal
    # P = 0.5*w*sum_ij M_ij diff^2 = 0.25*w*sum_ij S_ij diff^2  (diff is symmetric)
    p = 0.25 * w * jnp.sum(sdiff * diff)
    e_ref[0, 0] = -1.0 * p                                          # module: energy = -P

    # --- analytic dP/drecon, lane-dense:  -w * (rowsum(coeff)*x2 - x2 @ coeff) ---
    coeff = sdiff * inv_d2                                          # symmetric, zero diagonal
    rs = jnp.sum(coeff, axis=0, keepdims=True)                      # (1, N)
    gx = -w * (rs * x2 - jnp.dot(x2, coeff,
                                 preferred_element_type=jnp.float32))   # (3, N)

    # --- decoder backward chained in-register: dP/dcode = sum_c gx[c] @ Wc[c]^T ---
    gcode = jnp.dot(gx[0:1, :], wct_ref[0], preferred_element_type=jnp.float32)
    gcode = gcode + jnp.dot(gx[1:2, :], wct_ref[1], preferred_element_type=jnp.float32)
    gcode = gcode + jnp.dot(gx[2:3, :], wct_ref[2], preferred_element_type=jnp.float32)
    gcode_ref[...] = gcode                                          # (1, L) == dP/dcode


def log_asap_energy(code, d1, S, asap_weight, Wc, WcT, b_rows):
    """Returns (energy, -d(energy)/d(code)) like the torch module."""
    code2d = code.reshape(1, -1).astype(jnp.float32)                # np.expand_dims(code, 0)
    w = jnp.full((1, 1), asap_weight, dtype=jnp.float32)
    energy, grad_code = pl.pallas_call(
        _fused_kernel,
        in_specs=[
            pl.BlockSpec(memory_space=pltpu.MemorySpace.SMEM),      # asapWeight (1,1)
            pl.BlockSpec(memory_space=pltpu.MemorySpace.VMEM),      # code (1,L)
            pl.BlockSpec(memory_space=pltpu.MemorySpace.VMEM),      # Wc  (3,L,N)
            pl.BlockSpec(memory_space=pltpu.MemorySpace.VMEM),      # WcT (3,N,L)
            pl.BlockSpec(memory_space=pltpu.MemorySpace.VMEM),      # bias rows (3,N)
            pl.BlockSpec(memory_space=pltpu.MemorySpace.VMEM),      # d1 (N,N) precomputed
            pl.BlockSpec(memory_space=pltpu.MemorySpace.VMEM),      # S  (N,N) neighbor weights
        ],
        out_specs=[
            pl.BlockSpec(memory_space=pltpu.MemorySpace.SMEM),      # energy (1,1)
            pl.BlockSpec(memory_space=pltpu.MemorySpace.VMEM),      # dP/dcode (1,L)
        ],
        out_shape=(
            jax.ShapeDtypeStruct((1, 1), jnp.float32),
            jax.ShapeDtypeStruct((1, LATENT), jnp.float32),
        ),
        scratch_shapes=[pltpu.VMEM((3, N_POINTS), jnp.float32)],    # reconstruction (3,N)
    )(w, code2d, Wc, WcT, b_rows, d1, S)
    return energy[0, 0], grad_code[0]


# ---------------------------------------------------------------------------
# Pure-JAX reference (straightforward math + autodiff, mirrors torch autograd)
# ---------------------------------------------------------------------------
def _reference(code, xyz1, M, asap_w, W_flat, b_flat):
    n = xyz1.shape[0]
    eye = jnp.eye(n, dtype=jnp.float32)

    def pdist(x):
        d2 = jnp.sum((x[:, None, :] - x[None, :, :]) ** 2, axis=-1)
        return jnp.sqrt(d2 + eye)            # diag -> 1; masked out by M's zero diagonal

    d1 = pdist(xyz1)

    def P(c):
        recon = (c.reshape(1, -1) @ W_flat + b_flat).reshape(n, 3)
        diff = d1 - pdist(recon)
        return 0.5 * asap_w * jnp.sum(M * diff * diff)

    p, dp_dcode = jax.value_and_grad(P)(code)
    return -p, dp_dcode                       # (energy, -1 * d(energy)/dcode)


if __name__ == "__main__":
    key = jax.random.PRNGKey(0)
    k1, k2, k3, k4 = jax.random.split(key, 4)

    xyz1 = jax.random.normal(k1, (N_POINTS, 3), dtype=jnp.float32)           # target cloud
    code = jax.random.normal(k2, (LATENT,), dtype=jnp.float32)               # latent code
    W3 = 0.1 * jax.random.normal(k3, (LATENT, N_POINTS, 3), dtype=jnp.float32)
    b3 = 0.1 * jax.random.normal(k4, (N_POINTS, 3), dtype=jnp.float32)
    asap_weight = 0.5

    # ---- one-time module setup (host): target distances + dense neighbor weights ----
    xyz1_np = np.asarray(xyz1)
    d1_np = np.sqrt(np.maximum(
        ((xyz1_np[:, None, :] - xyz1_np[None, :, :]) ** 2).sum(-1), 0.0)).astype(np.float32)
    np.fill_diagonal(d1_np, 0.0)

    KMAX = 8
    rng = np.random.RandomState(0)
    order = np.argsort(d1_np, axis=1)                                        # kNN graph on xyz1
    neighbors_matrix = order[:, 1:KMAX + 1].astype(np.int32)                 # skip self
    num_neighbors = (4 + (np.arange(N_POINTS) % 5)).astype(np.int32)         # 4..8 neighbors
    weight_matrix = rng.uniform(0.5, 1.5, size=(N_POINTS, KMAX)).astype(np.float32)

    M = np.zeros((N_POINTS, N_POINTS), dtype=np.float32)                     # dense edge weights
    for i in range(N_POINTS):
        for k in range(int(num_neighbors[i])):
            M[i, neighbors_matrix[i, k]] = weight_matrix[i, k]
    np.fill_diagonal(M, 0.0)
    S = (M + M.T).astype(np.float32)                                         # symmetrized

    # decoder weights in the layouts the fused kernel consumes
    W3_np = np.asarray(W3)
    Wc = jnp.asarray(np.ascontiguousarray(np.transpose(W3_np, (2, 0, 1))))   # (3, L, N)
    WcT = jnp.asarray(np.ascontiguousarray(np.transpose(W3_np, (2, 1, 0))))  # (3, N, L)
    b_rows = jnp.asarray(np.ascontiguousarray(np.asarray(b3).T))             # (3, N)

    energy, grad = log_asap_energy(code, jnp.asarray(d1_np), jnp.asarray(S),
                                   asap_weight, Wc, WcT, b_rows)
    jax.block_until_ready((energy, grad))

    # reference uses the natural (L, 3N) flat decoder weights
    W_flat = W3.reshape(LATENT, 3 * N_POINTS)
    b_flat = b3.reshape(1, 3 * N_POINTS)
    e_ref, g_ref = _reference(code, xyz1, jnp.asarray(M), asap_weight, W_flat, b_flat)

    assert np.isfinite(float(energy)) and np.all(np.isfinite(np.asarray(grad)))
    assert np.allclose(float(energy), float(e_ref), rtol=1e-2, atol=1e-3), (energy, e_ref)
    assert np.allclose(np.asarray(grad), np.asarray(g_ref), rtol=2e-2, atol=2e-3), (
        float(np.max(np.abs(np.asarray(grad) - np.asarray(g_ref)))))

    print("KERNEL_OK")
</pallas_src>

<mosaic_0001>
module attributes {stable_mosaic.version = 11 : i64} {
  func.func @_fused_kernel(%arg0: memref<1x1xf32, #tpu.memory_space<smem>>, %arg1: memref<1x32xf32, #tpu.memory_space<vmem>>, %arg2: memref<3x32x64xf32, #tpu.memory_space<vmem>>, %arg3: memref<3x64x32xf32, #tpu.memory_space<vmem>>, %arg4: memref<3x64xf32, #tpu.memory_space<vmem>>, %arg5: memref<64x64xf32, #tpu.memory_space<vmem>>, %arg6: memref<64x64xf32, #tpu.memory_space<vmem>>, %arg7: memref<1x1xf32, #tpu.memory_space<smem>>, %arg8: memref<1x32xf32, #tpu.memory_space<vmem>>, %arg9: memref<3x64xf32, #tpu.memory_space<vmem>>) attributes {dimension_semantics = [], scalar_prefetch = 0 : i64, scratch_operands = 1 : i64, tpu.core_type = #tpu.core_type<tc>} {
    %c0 = arith.constant 0 : index
    %c0_0 = arith.constant 0 : index
    %0 = memref.load %arg0[%c0, %c0_0] : memref<1x1xf32, #tpu.memory_space<smem>>
    %c0_1 = arith.constant 0 : index
    %c0_2 = arith.constant 0 : index
    %1 = vector.load %arg1[%c0_1, %c0_2] : memref<1x32xf32, #tpu.memory_space<vmem>>, vector<1x32xf32>
    %c0_3 = arith.constant 0 : index
    %c0_4 = arith.constant 0 : index
    %c0_5 = arith.constant 0 : index
    %2 = vector.load %arg2[%c0_3, %c0_4, %c0_5] : memref<3x32x64xf32, #tpu.memory_space<vmem>>, vector<1x32x64xf32>
    %3 = vector.shape_cast %2 : vector<1x32x64xf32> to vector<32x64xf32>
    %cst = arith.constant dense<0.000000e+00> : vector<1x64xf32>
    %4 = tpu.matmul %1, %3, %cst {dimension_numbers = #tpu.dot_dimension_numbers<[1], [0], [0], [1], [0, 0, 1, 1], [], []>} : vector<1x32xf32>, vector<32x64xf32>, vector<1x64xf32> -> vector<1x64xf32>
    %c0_6 = arith.constant 0 : index
    %c0_7 = arith.constant 0 : index
    %5 = vector.load %arg9[%c0_6, %c0_7] : memref<3x64xf32, #tpu.memory_space<vmem>>, vector<1x64xf32>
    tpu.vector_store %arg9[%c0_6, %c0_7], %4 {strides = array<i32>} : memref<3x64xf32, #tpu.memory_space<vmem>>, vector<1x64xf32>,
    %c1 = arith.constant 1 : index
    %c0_8 = arith.constant 0 : index
    %c0_9 = arith.constant 0 : index
    %6 = vector.load %arg2[%c1, %c0_8, %c0_9] : memref<3x32x64xf32, #tpu.memory_space<vmem>>, vector<1x32x64xf32>
    %7 = vector.shape_cast %6 : vector<1x32x64xf32> to vector<32x64xf32>
    %cst_10 = arith.constant dense<0.000000e+00> : vector<1x64xf32>
    %8 = tpu.matmul %1, %7, %cst_10 {dimension_numbers = #tpu.dot_dimension_numbers<[1], [0], [0], [1], [0, 0, 1, 1], [], []>} : vector<1x32xf32>, vector<32x64xf32>, vector<1x64xf32> -> vector<1x64xf32>
    %c1_11 = arith.constant 1 : index
    %c0_12 = arith.constant 0 : index
    %9 = vector.load %arg9[%c1_11, %c0_12] : memref<3x64xf32, #tpu.memory_space<vmem>>, vector<1x64xf32>
    tpu.vector_store %arg9[%c1_11, %c0_12], %8 {strides = array<i32>} : memref<3x64xf32, #tpu.memory_space<vmem>>, vector<1x64xf32>,
    %c2 = arith.constant 2 : index
    %c0_13 = arith.constant 0 : index
    %c0_14 = arith.constant 0 : index
    %10 = vector.load %arg2[%c2, %c0_13, %c0_14] : memref<3x32x64xf32, #tpu.memory_space<vmem>>, vector<1x32x64xf32>
    %11 = vector.shape_cast %10 : vector<1x32x64xf32> to vector<32x64xf32>
    %cst_15 = arith.constant dense<0.000000e+00> : vector<1x64xf32>
    %12 = tpu.matmul %1, %11, %cst_15 {dimension_numbers = #tpu.dot_dimension_numbers<[1], [0], [0], [1], [0, 0, 1, 1], [], []>} : vector<1x32xf32>, vector<32x64xf32>, vector<1x64xf32> -> vector<1x64xf32>
    %c2_16 = arith.constant 2 : index
    %c0_17 = arith.constant 0 : index
    %13 = vector.load %arg9[%c2_16, %c0_17] : memref<3x64xf32, #tpu.memory_space<vmem>>, vector<1x64xf32>
    tpu.vector_store %arg9[%c2_16, %c0_17], %12 {strides = array<i32>} : memref<3x64xf32, #tpu.memory_space<vmem>>, vector<1x64xf32>,
    %c0_18 = arith.constant 0 : index
    %c0_19 = arith.constant 0 : index
    %14 = vector.load %arg9[%c0_18, %c0_19] : memref<3x64xf32, #tpu.memory_space<vmem>>, vector<3x64xf32>
    %c0_20 = arith.constant 0 : index
    %c0_21 = arith.constant 0 : index
    %15 = vector.load %arg4[%c0_20, %c0_21] : memref<3x64xf32, #tpu.memory_space<vmem>>, vector<3x64xf32>
    %16 = arith.addf %14, %15 : vector<3x64xf32>
    %17 = tpu.iota {dimensions = array<i32: 0>} : vector<64x64xi32>
    %18 = tpu.iota {dimensions = array<i32: 1>} : vector<64x64xi32>
    %19 = arith.cmpi eq, %17, %18 : vector<64x64xi32>
    %20 = arith.extui %19 : vector<64x64xi1> to vector<64x64xi32>
    %21 = arith.sitofp %20 : vector<64x64xi32> to vector<64x64xf32>
    %cst_22 = arith.constant dense<0.000000e+00> : vector<64x64xf32>
    %22 = tpu.matmul %16, %16, %cst_22 {dimension_numbers = #tpu.dot_dimension_numbers<[0], [0], [1], [1], [0, 1, 1, 1], [], []>} : vector<3x64xf32>, vector<3x64xf32>, vector<64x64xf32> -> vector<64x64xf32>
    %23 = arith.mulf %16, %16 : vector<3x64xf32>
    %cst_23 = arith.constant dense<0.000000e+00> : vector<64xf32>
    %24 = vector.multi_reduction <add>, %23, %cst_23 [0] : vector<3x64xf32> to vector<64xf32>
    %25 = vector.shape_cast %24 : vector<64xf32> to vector<1x64xf32>
    %26 = arith.mulf %22, %21 : vector<64x64xf32>
    %cst_24 = arith.constant dense<0.000000e+00> : vector<64xf32>
    %27 = vector.multi_reduction <add>, %26, %cst_24 [1] : vector<64x64xf32> to vector<64xf32>
    %28 = vector.shape_cast %27 : vector<64xf32> to vector<64x1xf32>
    %29 = vector.broadcast %28 : vector<64x1xf32> to vector<64x64xf32>
    %30 = vector.broadcast %25 : vector<1x64xf32> to vector<64x64xf32>
    %31 = arith.addf %29, %30 : vector<64x64xf32>
    %cst_25 = arith.constant 2.000000e+00 : f32
    %32 = vector.broadcast %cst_25 : f32 to vector<64x64xf32>
    %33 = arith.mulf %32, %22 : vector<64x64xf32>
    %34 = arith.subf %31, %33 : vector<64x64xf32>
    %cst_26 = arith.constant 0.000000e+00 : f32
    %35 = vector.broadcast %cst_26 : f32 to vector<64x64xf32>
    %36 = arith.maximumf %34, %35 : vector<64x64xf32>
    %37 = arith.addf %36, %21 : vector<64x64xf32>
    %38 = math.rsqrt %37 : vector<64x64xf32>
    %39 = arith.mulf %36, %38 : vector<64x64xf32>
    %c0_27 = arith.constant 0 : index
    %c0_28 = arith.constant 0 : index
    %40 = vector.load %arg5[%c0_27, %c0_28] : memref<64x64xf32, #tpu.memory_space<vmem>>, vector<64x64xf32>
    %41 = arith.subf %40, %39 : vector<64x64xf32>
    %c0_29 = arith.constant 0 : index
    %c0_30 = arith.constant 0 : index
    %42 = vector.load %arg6[%c0_29, %c0_30] : memref<64x64xf32, #tpu.memory_space<vmem>>, vector<64x64xf32>
    %43 = arith.mulf %42, %41 : vector<64x64xf32>
    %cst_31 = arith.constant 2.500000e-01 : f32
    %44 = arith.mulf %cst_31, %0 : f32
    %45 = arith.mulf %43, %41 : vector<64x64xf32>
    %46 = vector.shape_cast %45 : vector<64x64xf32> to vector<1x64x64xf32>
    %cst_32 = arith.constant dense<0.000000e+00> : vector<1xf32>
    %47 = vector.multi_reduction <add>, %46, %cst_32 [1, 2] : vector<1x64x64xf32> to vector<1xf32>
    %48 = vector.shape_cast %47 : vector<1xf32> to vector<1x1x1xf32>
    %49 = vector.extract %48[0, 0, 0] : f32 from vector<1x1x1xf32>
    %50 = arith.mulf %44, %49 : f32
    %cst_33 = arith.constant -1.000000e+00 : f32
    %51 = arith.mulf %cst_33, %50 : f32
    %c0_34 = arith.constant 0 : index
    %c0_35 = arith.constant 0 : index
    %52 = memref.load %arg7[%c0_34, %c0_35] : memref<1x1xf32, #tpu.memory_space<smem>>
    memref.store %51, %arg7[%c0_34, %c0_35] : memref<1x1xf32, #tpu.memory_space<smem>>
    %53 = arith.mulf %43, %38 : vector<64x64xf32>
    %cst_36 = arith.constant dense<0.000000e+00> : vector<64xf32>
    %54 = vector.multi_reduction <add>, %53, %cst_36 [0] : vector<64x64xf32> to vector<64xf32>
    %55 = vector.shape_cast %54 : vector<64xf32> to vector<1x64xf32>
    %cst_37 = arith.constant 0.000000e+00 : f32
    %56 = arith.subf %cst_37, %0 : f32
    %57 = vector.broadcast %55 : vector<1x64xf32> to vector<3x64xf32>
    %58 = arith.mulf %57, %16 : vector<3x64xf32>
    %cst_38 = arith.constant dense<0.000000e+00> : vector<3x64xf32>
    %59 = tpu.matmul %16, %53, %cst_38 {dimension_numbers = #tpu.dot_dimension_numbers<[1], [0], [0], [1], [0, 0, 1, 1], [], []>} : vector<3x64xf32>, vector<64x64xf32>, vector<3x64xf32> -> vector<3x64xf32>
    %60 = arith.subf %58, %59 : vector<3x64xf32>
    %61 = vector.broadcast %56 : f32 to vector<3x64xf32>
    %62 = arith.mulf %61, %60 : vector<3x64xf32>
    %63 = vector.extract_strided_slice %62 {offsets = [0, 0], sizes = [1, 64], strides = [1, 1]} : vector<3x64xf32> to vector<1x64xf32>
    %c0_39 = arith.constant 0 : index
    %c0_40 = arith.constant 0 : index
    %c0_41 = arith.constant 0 : index
    %64 = vector.load %arg3[%c0_39, %c0_40, %c0_41] : memref<3x64x32xf32, #tpu.memory_space<vmem>>, vector<1x64x32xf32>
    %65 = vector.shape_cast %64 : vector<1x64x32xf32> to vector<64x32xf32>
    %cst_42 = arith.constant dense<0.000000e+00> : vector<1x32xf32>
    %66 = tpu.matmul %63, %65, %cst_42 {dimension_numbers = #tpu.dot_dimension_numbers<[1], [0], [0], [1], [0, 0, 1, 1], [], []>} : vector<1x64xf32>, vector<64x32xf32>, vector<1x32xf32> -> vector<1x32xf32>
    %67 = vector.extract_strided_slice %62 {offsets = [1, 0], sizes = [1, 64], strides = [1, 1]} : vector<3x64xf32> to vector<1x64xf32>
    %c1_43 = arith.constant 1 : index
    %c0_44 = arith.constant 0 : index
    %c0_45 = arith.constant 0 : index
    %68 = vector.load %arg3[%c1_43, %c0_44, %c0_45] : memref<3x64x32xf32, #tpu.memory_space<vmem>>, vector<1x64x32xf32>
    %69 = vector.shape_cast %68 : vector<1x64x32xf32> to vector<64x32xf32>
    %cst_46 = arith.constant dense<0.000000e+00> : vector<1x32xf32>
    %70 = tpu.matmul %67, %69, %cst_46 {dimension_numbers = #tpu.dot_dimension_numbers<[1], [0], [0], [1], [0, 0, 1, 1], [], []>} : vector<1x64xf32>, vector<64x32xf32>, vector<1x32xf32> -> vector<1x32xf32>
    %71 = arith.addf %66, %70 : vector<1x32xf32>
    %72 = vector.extract_strided_slice %62 {offsets = [2, 0], sizes = [1, 64], strides = [1, 1]} : vector<3x64xf32> to vector<1x64xf32>
    %c2_47 = arith.constant 2 : index
    %c0_48 = arith.constant 0 : index
    %c0_49 = arith.constant 0 : index
    %73 = vector.load %arg3[%c2_47, %c0_48, %c0_49] : memref<3x64x32xf32, #tpu.memory_space<vmem>>, vector<1x64x32xf32>
    %74 = vector.shape_cast %73 : vector<1x64x32xf32> to vector<64x32xf32>
    %cst_50 = arith.constant dense<0.000000e+00> : vector<1x32xf32>
    %75 = tpu.matmul %72, %74, %cst_50 {dimension_numbers = #tpu.dot_dimension_numbers<[1], [0], [0], [1], [0, 0, 1, 1], [], []>} : vector<1x64xf32>, vector<64x32xf32>, vector<1x32xf32> -> vector<1x32xf32>
    %76 = arith.addf %71, %75 : vector<1x32xf32>
    %c0_51 = arith.constant 0 : index
    %c0_52 = arith.constant 0 : index
    %77 = vector.load %arg8[%c0_51, %c0_52] : memref<1x32xf32, #tpu.memory_space<vmem>>, vector<1x32xf32>
    tpu.vector_store %arg8[%c0_51, %c0_52], %76 {strides = array<i32>} : memref<1x32xf32, #tpu.memory_space<vmem>>, vector<1x32xf32>,
    return
  }
}

</mosaic_0001>

<llo_original>
// kernel: tpu_custom_call.1
$region0: #{tpu_custom_call.1}
  #allocation0 [shape = 'u32[]', space=smem, size = 0x4, offset = 0x4, fixed_abs, tag = 'smem constant byte address 0x4 - core index']
  #allocation1 [shape = 'u32[144,128]{1,0:T(1,128)}', space=vmem, size = 0x12000, scoped, tag = 'internal scratch']
  #allocation2 [shape = 'f32[3,64]{1,0:T(4,128)}', space=vmem, size = 0x800, scoped, tag = 'scratch operand']
  #allocation3 [shape = 'f32[1,1]{1,0:T(1,128)S(6)}', space=smem, size = 0x200, scoped, tag = 'scoped memory for tpu_custom_call.1']
  %s0 = inlined_call_operand.<no memory space> [shape: f32[1,1], index: 0, kind: input, shape index: {}]
  %s1 = inlined_call_operand.vmem [shape: f32[1,32], index: 1, kind: input, shape index: {}]
  %s2 = inlined_call_operand.vmem [shape: f32[3,32,64], index: 2, kind: input, shape index: {}]
  %s3 = inlined_call_operand.vmem [shape: f32[3,64,32], index: 3, kind: input, shape index: {}]
  %s4 = inlined_call_operand.vmem [shape: f32[3,64], index: 4, kind: input, shape index: {}]
  %s5 = inlined_call_operand.vmem [shape: f32[64,64], index: 5, kind: input, shape index: {}]
  %s6 = inlined_call_operand.vmem [shape: f32[64,64], index: 6, kind: input, shape index: {}]
  %s7 = inlined_call_operand.hbm [shape: f32[1,1], index: 7, kind: output, shape index: {0}]
  %s8 = inlined_call_operand.hbm [shape: f32[1,32], index: 8, kind: output, shape index: {1}]
  %9 = xla_tuple %s7, %s8
  %s10 = sld [smem:[#allocation0]]
  $region46: #{tpu_custom_call.1} parent=0
    _
  %s12 = ssub.s32 1, %s10
  %s13 = scalar_select 0, %s12, %s10
  %14 = sst [smem:[#allocation3]] %s0
  $region1: #{tpu_custom_call.1} parent=0
    #allocation4 [shape = 'u8[512]{0}', space=smem, size = 0x200, scoped, tag = 'output window, operand 0, single buffered']
    #allocation5 [shape = 's32[1]{0}', space=sflag, size = 0x4, scoped, tag = 'scoped memory for tpu_custom_call.1']
    #allocation6 [shape = 's32[1]{0}', space=sflag, size = 0x4, scoped, tag = 'scoped memory for tpu_custom_call.1']
    #allocation7 [shape = 'u8[512]{0}', space=vmem, size = 0x400, scoped, tag = 'output window, operand 1, single buffered']
    %15 = vsyncpa [#allocation6], 0
    %16 = vsyncpa [#allocation5], 0
    // Predicated region
    $region2: #{tpu_custom_call.1} parent=1 // pred_check
      _
    $region3: #{tpu_custom_call.1} parent=1 // pred_check_branch
      %18 = sbr.rel (0) target = $region5
    $region4: #{tpu_custom_call.1} parent=1 // pred_region
      _
    $region5: #{tpu_custom_call.1} parent=1 // pred_fallthru
      _
    // Predicated region
    $region6: #{tpu_custom_call.1} parent=1 // pred_check
      _
    $region7: #{tpu_custom_call.1} parent=1 // pred_check_branch
      %20 = sbr.rel (0) target = $region9
    $region8: #{tpu_custom_call.1} parent=1 // pred_region
      _
    $region9: #{tpu_custom_call.1} parent=1 // pred_fallthru
      _
    // Predicated region
    $region10: #{tpu_custom_call.1} parent=1 // pred_check
      _
    $region11: #{tpu_custom_call.1} parent=1 // pred_check_branch
      %22 = sbr.rel (0) target = $region13
    $region12: #{tpu_custom_call.1} parent=1 // pred_region
      _
    $region13: #{tpu_custom_call.1} parent=1 // pred_fallthru
      _
    // Predicated region
    $region14: #{tpu_custom_call.1} parent=1 // pred_check
      _
    $region15: #{tpu_custom_call.1} parent=1 // pred_check_branch
      %24 = sbr.rel (0) target = $region17
    $region16: #{tpu_custom_call.1} parent=1 // pred_region
      _
    $region17: #{tpu_custom_call.1} parent=1 // pred_fallthru
      _
    // Predicated region
    $region18: #{tpu_custom_call.1} parent=1 // pred_check
      _
    $region19: #{tpu_custom_call.1} parent=1 // pred_check_branch
      %26 = sbr.rel (0) target = $region21
    $region20: #{tpu_custom_call.1} parent=1 // pred_region
      _
    $region21: #{tpu_custom_call.1} parent=1 // pred_fallthru
      _
    // Predicated region
    $region22: #{tpu_custom_call.1} parent=1 // pred_check
      _
    $region23: #{tpu_custom_call.1} parent=1 // pred_check_branch
      %28 = sbr.rel (0) target = $region25
    $region24: #{tpu_custom_call.1} parent=1 // pred_region
      _
    $region25: #{tpu_custom_call.1} parent=1 // pred_fallthru
      _
    // Predicated region
    $region26: #{tpu_custom_call.1} parent=1 // pred_check
      _
    $region27: #{tpu_custom_call.1} parent=1 // pred_check_branch
      %30 = sbr.rel (0) target = $region29
    $region28: #{tpu_custom_call.1} parent=1 // pred_region
      _
    $region29: #{tpu_custom_call.1} parent=1 // pred_fallthru
      _
    %s31 = sld [smem:[#allocation3]]
    %v32 = vld [vmem:[%s1] sm:$0x1]
    %v33 = vld [vmem:[%s2] sm:$0xff]
    %v34 = vld [vmem:[%s2 + $0x8] sm:$0xff]
    %v35 = vld [vmem:[%s2 + $0x10] sm:$0xff]
    %v36 = vld [vmem:[%s2 + $0x18] sm:$0xff]
    %vm37 = vcmask 261120
    %v39 = vsel %vm37, %v32, 0
    %41 = vmatprep.subr.mxu0 0.0
    %42 = vmatpush1.msra.mxu0 %v33
    %43 = vmatprep.subr.mxu0 0.0
    %44 = vmatpush1.msra.mxu0 %v34
    %45 = vmatprep.subr.mxu0 0.0
    %46 = vmatpush1.msra.mxu0 %v35
    %47 = vmatprep.subr.mxu0 0.0
    %48 = vmatpush1.msra.mxu0 %v36
    %49 = vmatprep.subr.mxu0 0.0
    %50 = vmatpush1.msra.mxu0 0.0
    %51 = vmatprep.subr.mxu0 0.0
    %52 = vmatpush1.msra.mxu0 0.0
    %53 = vmatprep.subr.mxu0 0.0
    %54 = vmatpush1.msra.mxu0 0.0
    %55 = vmatprep.subr.mxu0 0.0
    %56 = vmatpush1.msra.mxu0 0.0
    %57 = vmatprep.subr.mxu0 0.0
    %58 = vmatpush1.msra.mxu0 0.0
    %59 = vmatprep.subr.mxu0 0.0
    %60 = vmatpush1.msra.mxu0 0.0
    %61 = vmatprep.subr.mxu0 0.0
    %62 = vmatpush1.msra.mxu0 0.0
    %63 = vmatprep.subr.mxu0 0.0
    %64 = vmatpush1.msra.mxu0 0.0
    %65 = vmatprep.subr.mxu0 0.0
    %66 = vmatpush1.msra.mxu0 0.0
    %67 = vmatprep.subr.mxu0 0.0
    %68 = vmatpush1.msra.mxu0 0.0
    %69 = vmatprep.subr.mxu0 0.0
    %70 = vmatpush1.msra.mxu0 0.0
    %71 = vmatprep.subr.mxu0 0.0
    %72 = vmatpush1.msra.mxu0 0.0
    %73 = vmatprep.subr.mxu0 0.0
    %74 = vmatpush1.msra.mxu0 0.0
    %75 = vmatprep.subr.mxu0 0.0
    %76 = vmatpush1.msra.mxu0 0.0
    %77 = vmatprep.subr.mxu0 0.0
    %78 = vmatpush1.msra.mxu0 0.0
    %79 = vmatprep.subr.mxu0 0.0
    %80 = vmatpush1.msra.mxu0 0.0
    %81 = vmatprep.subr.mxu0 0.0
    %82 = vmatpush1.msra.mxu0 0.0
    %83 = vmatprep.subr.mxu0 0.0
    %84 = vmatpush1.msra.mxu0 0.0
    %85 = vmatprep.subr.mxu0 0.0
    %86 = vmatpush1.msra.mxu0 0.0
    %87 = vmatprep.subr.mxu0 0.0
    %88 = vmatpush1.msra.mxu0 0.0
    %89 = vmatprep.subr.mxu0 0.0
    %90 = vmatpush1.msra.mxu0 0.0
    %91 = vmatprep.subr.mxu0 0.0
    %92 = vmatpush1.msra.mxu0 0.0
    %93 = vmatprep.subr.mxu0 0.0
    %94 = vmatpush1.msra.mxu0 0.0
    %95 = vmatprep.subr.mxu0 0.0
    %96 = vmatpush1.msra.mxu0 0.0
    %97 = vmatprep.subr.mxu0 0.0
    %98 = vmatpush1.msra.mxu0 0.0
    %99 = vmatprep.subr.mxu0 0.0
    %100 = vmatpush1.msra.mxu0 0.0
    %101 = vmatprep.subr.mxu0 0.0
    %102 = vmatpush1.msra.mxu0 0.0
    %103 = vmatprep.subr.mxu0 0.0
    %104 = vmatpush1.msra.mxu0 0.0
    %105 = vmatprep.mubr.f32.mxu0 0.0
    %106 = vmatmul.mubr.f32.gmra.mrb[0].mxu0 %v39
    %v107 = vpop.f32.mrb[0].mxu0
    %v108 = vadd.f32 0.0, %v107
    %v109 = vpop.f32.mrb[0].mxu0
    %110 = vdwg.mxu0
    %vm111 = vcmask 516096
    %112 = vst.msk [vmem:[#allocation2] sm:$0x1] %vm111, %v108
    %s113 = scalar_lea.vmem %s2, 32
    %v114 = vld [vmem:[%s113] sm:$0xff]
    %v115 = vld [vmem:[%s113 + $0x8] sm:$0xff]
    %v116 = vld [vmem:[%s113 + $0x10] sm:$0xff]
    %v117 = vld [vmem:[%s113 + $0x18] sm:$0xff]
    %118 = vmatprep.subr.mxu0 0.0
    %119 = vmatpush1.msra.mxu0 %v114
    %120 = vmatprep.subr.mxu0 0.0
    %121 = vmatpush1.msra.mxu0 %v115
    %122 = vmatprep.subr.mxu0 0.0
    %123 = vmatpush1.msra.mxu0 %v116
    %124 = vmatprep.subr.mxu0 0.0
    %125 = vmatpush1.msra.mxu0 %v117
    %126 = vmatprep.subr.mxu0 0.0
    %127 = vmatpush1.msra.mxu0 0.0
    %128 = vmatprep.subr.mxu0 0.0
    %129 = vmatpush1.msra.mxu0 0.0
    %130 = vmatprep.subr.mxu0 0.0
    %131 = vmatpush1.msra.mxu0 0.0
    %132 = vmatprep.subr.mxu0 0.0
    %133 = vmatpush1.msra.mxu0 0.0
    %134 = vmatprep.subr.mxu0 0.0
    %135 = vmatpush1.msra.mxu0 0.0
    %136 = vmatprep.subr.mxu0 0.0
    %137 = vmatpush1.msra.mxu0 0.0
    %138 = vmatprep.subr.mxu0 0.0
    %139 = vmatpush1.msra.mxu0 0.0
    %140 = vmatprep.subr.mxu0 0.0
    %141 = vmatpush1.msra.mxu0 0.0
    %142 = vmatprep.subr.mxu0 0.0
    %143 = vmatpush1.msra.mxu0 0.0
    %144 = vmatprep.subr.mxu0 0.0
    %145 = vmatpush1.msra.mxu0 0.0
    %146 = vmatprep.subr.mxu0 0.0
    %147 = vmatpush1.msra.mxu0 0.0
    %148 = vmatprep.subr.mxu0 0.0
    %149 = vmatpush1.msra.mxu0 0.0
    %150 = vmatprep.subr.mxu0 0.0
    %151 = vmatpush1.msra.mxu0 0.0
    %152 = vmatprep.subr.mxu0 0.0
    %153 = vmatpush1.msra.mxu0 0.0
    %154 = vmatprep.subr.mxu0 0.0
    %155 = vmatpush1.msra.mxu0 0.0
    %156 = vmatprep.subr.mxu0 0.0
    %157 = vmatpush1.msra.mxu0 0.0
    %158 = vmatprep.subr.mxu0 0.0
    %159 = vmatpush1.msra.mxu0 0.0
    %160 = vmatprep.subr.mxu0 0.0
    %161 = vmatpush1.msra.mxu0 0.0
    %162 = vmatprep.subr.mxu0 0.0
    %163 = vmatpush1.msra.mxu0 0.0
    %164 = vmatprep.subr.mxu0 0.0
    %165 = vmatpush1.msra.mxu0 0.0
    %166 = vmatprep.subr.mxu0 0.0
    %167 = vmatpush1.msra.mxu0 0.0
    %168 = vmatprep.subr.mxu0 0.0
    %169 = vmatpush1.msra.mxu0 0.0
    %170 = vmatprep.subr.mxu0 0.0
    %171 = vmatpush1.msra.mxu0 0.0
    %172 = vmatprep.subr.mxu0 0.0
    %173 = vmatpush1.msra.mxu0 0.0
    %174 = vmatprep.subr.mxu0 0.0
    %175 = vmatpush1.msra.mxu0 0.0
    %176 = vmatprep.subr.mxu0 0.0
    %177 = vmatpush1.msra.mxu0 0.0
    %178 = vmatprep.subr.mxu0 0.0
    %179 = vmatpush1.msra.mxu0 0.0
    %180 = vmatprep.subr.mxu0 0.0
    %181 = vmatpush1.msra.mxu0 0.0
    %182 = vmatprep.mubr.f32.mxu0 0.0
    %183 = vmatmul.mubr.f32.gmra.mrb[0].mxu0 %v39
    %v184 = vpop.f32.mrb[0].mxu0
    %v185 = vadd.f32 0.0, %v184
    %v186 = vpop.f32.mrb[0].mxu0
    %187 = vdwg.mxu0
    %188 = vst.msk [vmem:[#allocation2 + $0x1] sm:$0x1] %vm111, %v185
    %s189 = scalar_lea.vmem %s2, 64
    %v190 = vld [vmem:[%s189] sm:$0xff]
    %v191 = vld [vmem:[%s189 + $0x8] sm:$0xff]
    %v192 = vld [vmem:[%s189 + $0x10] sm:$0xff]
    %v193 = vld [vmem:[%s189 + $0x18] sm:$0xff]
    %194 = vmatprep.subr.mxu0 0.0
    %195 = vmatpush1.msra.mxu0 %v190
    %196 = vmatprep.subr.mxu0 0.0
    %197 = vmatpush1.msra.mxu0 %v191
    %198 = vmatprep.subr.mxu0 0.0
    %199 = vmatpush1.msra.mxu0 %v192
    %200 = vmatprep.subr.mxu0 0.0
    %201 = vmatpush1.msra.mxu0 %v193
    %202 = vmatprep.subr.mxu0 0.0
    %203 = vmatpush1.msra.mxu0 0.0
    %204 = vmatprep.subr.mxu0 0.0
    %205 = vmatpush1.msra.mxu0 0.0
    %206 = vmatprep.subr.mxu0 0.0
    %207 = vmatpush1.msra.mxu0 0.0
    %208 = vmatprep.subr.mxu0 0.0
    %209 = vmatpush1.msra.mxu0 0.0
    %210 = vmatprep.subr.mxu0 0.0
    %211 = vmatpush1.msra.mxu0 0.0
    %212 = vmatprep.subr.mxu0 0.0
    %213 = vmatpush1.msra.mxu0 0.0
    %214 = vmatprep.subr.mxu0 0.0
    %215 = vmatpush1.msra.mxu0 0.0
    %216 = vmatprep.subr.mxu0 0.0
    %217 = vmatpush1.msra.mxu0 0.0
    %218 = vmatprep.subr.mxu0 0.0
    %219 = vmatpush1.msra.mxu0 0.0
    %220 = vmatprep.subr.mxu0 0.0
    %221 = vmatpush1.msra.mxu0 0.0
    %222 = vmatprep.subr.mxu0 0.0
    %223 = vmatpush1.msra.mxu0 0.0
    %224 = vmatprep.subr.mxu0 0.0
    %225 = vmatpush1.msra.mxu0 0.0
    %226 = vmatprep.subr.mxu0 0.0
    %227 = vmatpush1.msra.mxu0 0.0
    %228 = vmatprep.subr.mxu0 0.0
    %229 = vmatpush1.msra.mxu0 0.0
    %230 = vmatprep.subr.mxu0 0.0
    %231 = vmatpush1.msra.mxu0 0.0
    %232 = vmatprep.subr.mxu0 0.0
    %233 = vmatpush1.msra.mxu0 0.0
    %234 = vmatprep.subr.mxu0 0.0
    %235 = vmatpush1.msra.mxu0 0.0
    %236 = vmatprep.subr.mxu0 0.0
    %237 = vmatpush1.msra.mxu0 0.0
    %238 = vmatprep.subr.mxu0 0.0
    %239 = vmatpush1.msra.mxu0 0.0
    %240 = vmatprep.subr.mxu0 0.0
    %241 = vmatpush1.msra.mxu0 0.0
    %242 = vmatprep.subr.mxu0 0.0
    %243 = vmatpush1.msra.mxu0 0.0
    %244 = vmatprep.subr.mxu0 0.0
    %245 = vmatpush1.msra.mxu0 0.0
    %246 = vmatprep.subr.mxu0 0.0
    %247 = vmatpush1.msra.mxu0 0.0
    %248 = vmatprep.subr.mxu0 0.0
    %249 = vmatpush1.msra.mxu0 0.0
    %250 = vmatprep.subr.mxu0 0.0
    %251 = vmatpush1.msra.mxu0 0.0
    %252 = vmatprep.subr.mxu0 0.0
    %253 = vmatpush1.msra.mxu0 0.0
    %254 = vmatprep.subr.mxu0 0.0
    %255 = vmatpush1.msra.mxu0 0.0
    %256 = vmatprep.subr.mxu0 0.0
    %257 = vmatpush1.msra.mxu0 0.0
    %258 = vmatprep.mubr.f32.mxu0 0.0
    %259 = vmatmul.mubr.f32.gmra.mrb[0].mxu0 %v39
    %v260 = vpop.f32.mrb[0].mxu0
    %v261 = vadd.f32 0.0, %v260
    %v262 = vpop.f32.mrb[0].mxu0
    %263 = vdwg.mxu0
    %264 = vst.msk [vmem:[#allocation2 + $0x2] sm:$0x1] %vm111, %v261
    %v265 = vld [vmem:[#allocation2] sm:$0x7]
    %v266 = vld [vmem:[%s4] sm:$0x7]
    %v267 = vadd.f32 %v265, %v266
    %v268 = vlaneseq
    %v269 = vshrl.u32 %v268, 7
    %v270 = vadd.s32 %v269, 8
    %v271 = vadd.s32 %v269, 16
    %v272 = vadd.s32 %v269, 24
    %v273 = vadd.s32 %v269, 32
    %v274 = vadd.s32 %v269, 40
    %v275 = vadd.s32 %v269, 48
    %v276 = vadd.s32 %v269, 56
    %v277 = vlaneseq
    %v278 = vand.u32 %v277, 127
    %vm279 = vcmp.eq.s32.totalorder %v269, %v278
    %vm280 = vcmp.eq.s32.totalorder %v270, %v278
    %vm281 = vcmp.eq.s32.totalorder %v271, %v278
    %vm282 = vcmp.eq.s32.totalorder %v272, %v278
    %vm283 = vcmp.eq.s32.totalorder %v273, %v278
    %vm284 = vcmp.eq.s32.totalorder %v274, %v278
    %vm285 = vcmp.eq.s32.totalorder %v275, %v278
    %vm286 = vcmp.eq.s32.totalorder %v276, %v278
    %v287 = vsel %vm279, 1, 0
    %v288 = vsel %vm280, 1, 0
    %v289 = vsel %vm281, 1, 0
    %v290 = vsel %vm282, 1, 0
    %v291 = vsel %vm283, 1, 0
    %v292 = vsel %vm284, 1, 0
    %v293 = vsel %vm285, 1, 0
    %v294 = vsel %vm286, 1, 0
    %v295 = vcvt.s32.f32 %v287
    %v296 = vcvt.s32.f32 %v288
    %v297 = vcvt.s32.f32 %v289
    %v298 = vcvt.s32.f32 %v290
    %v299 = vcvt.s32.f32 %v291
    %v300 = vcvt.s32.f32 %v292
    %v301 = vcvt.s32.f32 %v293
    %v302 = vcvt.s32.f32 %v294
    %303 = vxpose.xlu0.b32.start [1/16] %v267, 128
    %304 = vxpose.xlu0.b32.cont [2/16] 0.0, 128
    %305 = vxpose.xlu0.b32.cont [3/16] 0.0, 128
    %306 = vxpose.xlu0.b32.cont [4/16] 0.0, 128
    %307 = vxpose.xlu0.b32.cont [5/16] 0.0, 128
    %308 = vxpose.xlu0.b32.cont [6/16] 0.0, 128
    %309 = vxpose.xlu0.b32.cont [7/16] 0.0, 128
    %310 = vxpose.xlu0.b32.cont [8/16] 0.0, 128
    %311 = vxpose.xlu0.b32.cont [9/16] 0.0, 128
    %312 = vxpose.xlu0.b32.cont [10/16] 0.0, 128
    %313 = vxpose.xlu0.b32.cont [11/16] 0.0, 128
    %314 = vxpose.xlu0.b32.cont [12/16] 0.0, 128
    %315 = vxpose.xlu0.b32.cont [13/16] 0.0, 128
    %316 = vxpose.xlu0.b32.cont [14/16] 0.0, 128
    %317 = vxpose.xlu0.b32.cont [15/16] 0.0, 128
    %318 = vxpose.xlu0.b32.end [16/16] 0.0, 128
    %v319 = vpop.trf.xlu0
    %v320 = vpop.trf.xlu0
    %v321 = vpop.trf.xlu0
    %v322 = vpop.trf.xlu0
    %v323 = vpop.trf.xlu0
    %v324 = vpop.trf.xlu0
    %v325 = vpop.trf.xlu0
    %v326 = vpop.trf.xlu0
    %v327 = vpop.trf.xlu0
    %v328 = vpop.trf.xlu0
    %v329 = vpop.trf.xlu0
    %v330 = vpop.trf.xlu0
    %v331 = vpop.trf.xlu0
    %v332 = vpop.trf.xlu0
    %v333 = vpop.trf.xlu0
    %v334 = vpop.trf.xlu0
    %vm335 = vcmask 23552
    %v337 = vsel %vm335, %v319, 0
    %v340 = vsel %vm335, %v320, 0
    %v343 = vsel %vm335, %v321, 0
    %v346 = vsel %vm335, %v322, 0
    %v349 = vsel %vm335, %v323, 0
    %v352 = vsel %vm335, %v324, 0
    %v355 = vsel %vm335, %v325, 0
    %v358 = vsel %vm335, %v326, 0
    %vm360 = vcmask 1042432
    %v362 = vsel %vm360, %v267, 0
    %364 = vmatprep.subr.mxu0 0.0
    %365 = vmatpush1.msra.mxu0 %v362
    %366 = vmatprep.subr.mxu0 0.0
    %367 = vmatpush1.msra.mxu0 0.0
    %368 = vmatprep.subr.mxu0 0.0
    %369 = vmatpush1.msra.mxu0 0.0
    %370 = vmatprep.subr.mxu0 0.0
    %371 = vmatpush1.msra.mxu0 0.0
    %372 = vmatprep.subr.mxu0 0.0
    %373 = vmatpush1.msra.mxu0 0.0
    %374 = vmatprep.subr.mxu0 0.0
    %375 = vmatpush1.msra.mxu0 0.0
    %376 = vmatprep.subr.mxu0 0.0
    %377 = vmatpush1.msra.mxu0 0.0
    %378 = vmatprep.subr.mxu0 0.0
    %379 = vmatpush1.msra.mxu0 0.0
    %380 = vmatprep.subr.mxu0 0.0
    %381 = vmatpush1.msra.mxu0 0.0
    %382 = vmatprep.subr.mxu0 0.0
    %383 = vmatpush1.msra.mxu0 0.0
    %384 = vmatprep.subr.mxu0 0.0
    %385 = vmatpush1.msra.mxu0 0.0
    %386 = vmatprep.subr.mxu0 0.0
    %387 = vmatpush1.msra.mxu0 0.0
    %388 = vmatprep.subr.mxu0 0.0
    %389 = vmatpush1.msra.mxu0 0.0
    %390 = vmatprep.subr.mxu0 0.0
    %391 = vmatpush1.msra.mxu0 0.0
    %392 = vmatprep.subr.mxu0 0.0
    %393 = vmatpush1.msra.mxu0 0.0
    %394 = vmatprep.subr.mxu0 0.0
    %395 = vmatpush1.msra.mxu0 0.0
    %396 = vmatprep.subr.mxu0 0.0
    %397 = vmatpush1.msra.mxu0 0.0
    %398 = vmatprep.subr.mxu0 0.0
    %399 = vmatpush1.msra.mxu0 0.0
    %400 = vmatprep.subr.mxu0 0.0
    %401 = vmatpush1.msra.mxu0 0.0
    %402 = vmatprep.subr.mxu0 0.0
    %403 = vmatpush1.msra.mxu0 0.0
    %404 = vmatprep.subr.mxu0 0.0
    %405 = vmatpush1.msra.mxu0 0.0
    %406 = vmatprep.subr.mxu0 0.0
    %407 = vmatpush1.msra.mxu0 0.0
    %408 = vmatprep.subr.mxu0 0.0
    %409 = vmatpush1.msra.mxu0 0.0
    %410 = vmatprep.subr.mxu0 0.0
    %411 = vmatpush1.msra.mxu0 0.0
    %412 = vmatprep.subr.mxu0 0.0
    %413 = vmatpush1.msra.mxu0 0.0
    %414 = vmatprep.subr.mxu0 0.0
    %415 = vmatpush1.msra.mxu0 0.0
    %416 = vmatprep.subr.mxu0 0.0
    %417 = vmatpush1.msra.mxu0 0.0
    %418 = vmatprep.subr.mxu0 0.0
    %419 = vmatpush1.msra.mxu0 0.0
    %420 = vmatprep.subr.mxu0 0.0
    %421 = vmatpush1.msra.mxu0 0.0
    %422 = vmatprep.subr.mxu0 0.0
    %423 = vmatpush1.msra.mxu0 0.0
    %424 = vmatprep.subr.mxu0 0.0
    %425 = vmatpush1.msra.mxu0 0.0
    %426 = vmatprep.subr.mxu0 0.0
    %427 = vmatpush1.msra.mxu0 0.0
    %428 = vmatprep.mubr.f32.mxu0 0.0
    %429 = vmatmul.mubr.f32.gmra.mrb[0].mxu0 %v337
    %v430 = vpop.f32.mrb[0].mxu0
    %v431 = vadd.f32 0.0, %v430
    %v432 = vpop.f32.mrb[0].mxu0
    %433 = vmatprep.mubr.f32.mxu0 0.0
    %434 = vmatmul.mubr.f32.gmra.mrb[0].mxu0 %v340
    %v435 = vpop.f32.mrb[0].mxu0
    %v436 = vadd.f32 0.0, %v435
    %v437 = vpop.f32.mrb[0].mxu0
    %438 = vmatprep.mubr.f32.mxu0 0.0
    %439 = vmatmul.mubr.f32.gmra.mrb[0].mxu0 %v343
    %v440 = vpop.f32.mrb[0].mxu0
    %v441 = vadd.f32 0.0, %v440
    %v442 = vpop.f32.mrb[0].mxu0
    %443 = vmatprep.mubr.f32.mxu0 0.0
    %444 = vmatmul.mubr.f32.gmra.mrb[0].mxu0 %v346
    %v445 = vpop.f32.mrb[0].mxu0
    %v446 = vadd.f32 0.0, %v445
    %v447 = vpop.f32.mrb[0].mxu0
    %448 = vmatprep.mubr.f32.mxu0 0.0
    %449 = vmatmul.mubr.f32.gmra.mrb[0].mxu0 %v349
    %v450 = vpop.f32.mrb[0].mxu0
    %v451 = vadd.f32 0.0, %v450
    %v452 = vpop.f32.mrb[0].mxu0
    %453 = vmatprep.mubr.f32.mxu0 0.0
    %454 = vmatmul.mubr.f32.gmra.mrb[0].mxu0 %v352
    %v455 = vpop.f32.mrb[0].mxu0
    %v456 = vadd.f32 0.0, %v455
    %v457 = vpop.f32.mrb[0].mxu0
    %458 = vmatprep.mubr.f32.mxu0 0.0
    %459 = vmatmul.mubr.f32.gmra.mrb[0].mxu0 %v355
    %v460 = vpop.f32.mrb[0].mxu0
    %v461 = vadd.f32 0.0, %v460
    %v462 = vpop.f32.mrb[0].mxu0
    %463 = vmatprep.mubr.f32.mxu0 0.0
    %464 = vmatmul.mubr.f32.gmra.mrb[0].mxu0 %v358
    %v465 = vpop.f32.mrb[0].mxu0
    %v466 = vadd.f32 0.0, %v465
    %v467 = vpop.f32.mrb[0].mxu0
    %468 = vdwg.mxu0
    %v469 = vmul.f32 %v267, %v267
    %vm470 = vcmask 518144
    %v471 = vsel %vm470, %v469, 0.0
    %v472 = vrot.slane %v471, 4
    %v473 = vadd.f32 %v471, %v472
    %v474 = vrot.slane %v473, 2
    %v475 = vadd.f32 %v473, %v474
    %v476 = vrot.slane %v475, 1
    %v477 = vadd.f32 %v475, %v476
    %v478 = vmul.f32 %v431, %v295
    %v479 = vmul.f32 %v436, %v296
    %v480 = vmul.f32 %v441, %v297
    %v481 = vmul.f32 %v446, %v298
    %v482 = vmul.f32 %v451, %v299
    %v483 = vmul.f32 %v456, %v300
    %v484 = vmul.f32 %v461, %v301
    %v485 = vmul.f32 %v466, %v302
    %vm486 = vcmask 523264
    %v487 = vsel %vm486, %v478, 0.0
    %488 = vadd.xlane.f32.xlu0 %v487
    %v489 = vpop.xlane.xlu0 %488
    %v490 = vsel %vm486, %v479, 0.0
    %491 = vadd.xlane.f32.xlu0 %v490
    %v492 = vpop.xlane.xlu0 %491
    %v493 = vsel %vm486, %v480, 0.0
    %494 = vadd.xlane.f32.xlu0 %v493
    %v495 = vpop.xlane.xlu0 %494
    %v496 = vsel %vm486, %v481, 0.0
    %497 = vadd.xlane.f32.xlu0 %v496
    %v498 = vpop.xlane.xlu0 %497
    %v499 = vsel %vm486, %v482, 0.0
    %500 = vadd.xlane.f32.xlu0 %v499
    %v501 = vpop.xlane.xlu0 %500
    %v502 = vsel %vm486, %v483, 0.0
    %503 = vadd.xlane.f32.xlu0 %v502
    %v504 = vpop.xlane.xlu0 %503
    %v505 = vsel %vm486, %v484, 0.0
    %506 = vadd.xlane.f32.xlu0 %v505
    %v507 = vpop.xlane.xlu0 %506
    %v508 = vsel %vm486, %v485, 0.0
    %509 = vadd.xlane.f32.xlu0 %v508
    %v510 = vpop.xlane.xlu0 %509
    %v511 = vadd.f32 %v489, %v477
    %v512 = vadd.f32 %v492, %v477
    %v513 = vadd.f32 %v495, %v477
    %v514 = vadd.f32 %v498, %v477
    %v515 = vadd.f32 %v501, %v477
    %v516 = vadd.f32 %v504, %v477
    %v517 = vadd.f32 %v507, %v477
    %v518 = vadd.f32 %v510, %v477
    %v519 = vmul.f32 %v431, 2.0
    %v520 = vmul.f32 %v436, 2.0
    %v521 = vmul.f32 %v441, 2.0
    %v522 = vmul.f32 %v446, 2.0
    %v523 = vmul.f32 %v451, 2.0
    %v524 = vmul.f32 %v456, 2.0
    %v525 = vmul.f32 %v461, 2.0
    %v526 = vmul.f32 %v466, 2.0
    %v527 = vsub.f32 %v511, %v519
    %v528 = vsub.f32 %v512, %v520
    %v529 = vsub.f32 %v513, %v521
    %v530 = vsub.f32 %v514, %v522
    %v531 = vsub.f32 %v515, %v523
    %v532 = vsub.f32 %v516, %v524
    %v533 = vsub.f32 %v517, %v525
    %v534 = vsub.f32 %v518, %v526
    %v535 = vmax.f32 %v527, 0.0
    %v536 = vmax.f32 %v528, 0.0
    %v537 = vmax.f32 %v529, 0.0
    %v538 = vmax.f32 %v530, 0.0
    %v539 = vmax.f32 %v531, 0.0
    %v540 = vmax.f32 %v532, 0.0
    %v541 = vmax.f32 %v533, 0.0
    %v542 = vmax.f32 %v534, 0.0
    %v543 = vadd.f32 %v535, %v295
    %v544 = vadd.f32 %v536, %v296
    %v545 = vadd.f32 %v537, %v297
    %v546 = vadd.f32 %v538, %v298
    %v547 = vadd.f32 %v539, %v299
    %v548 = vadd.f32 %v540, %v300
    %v549 = vadd.f32 %v541, %v301
    %v550 = vadd.f32 %v542, %v302
    %v551 = vrsqrt.pop %v543
    %v552 = vrsqrt.pop %v544
    %v553 = vrsqrt.pop %v545
    %v554 = vrsqrt.pop %v546
    %v555 = vrsqrt.pop %v547
    %v556 = vrsqrt.pop %v548
    %v557 = vrsqrt.pop %v549
    %v558 = vrsqrt.pop %v550
    %v559 = vmul.f32 %v535, %v551
    %v560 = vmul.f32 %v536, %v552
    %v561 = vmul.f32 %v537, %v553
    %v562 = vmul.f32 %v538, %v554
    %v563 = vmul.f32 %v539, %v555
    %v564 = vmul.f32 %v540, %v556
    %v565 = vmul.f32 %v541, %v557
    %v566 = vmul.f32 %v542, %v558
    %v567 = vld [vmem:[%s5] sm:$0xff]
    %v568 = vld [vmem:[%s5 + $0x8] sm:$0xff]
    %v569 = vld [vmem:[%s5 + $0x10] sm:$0xff]
    %v570 = vld [vmem:[%s5 + $0x18] sm:$0xff]
    %v571 = vld [vmem:[%s5 + $0x20] sm:$0xff]
    %v572 = vld [vmem:[%s5 + $0x28] sm:$0xff]
    %v573 = vld [vmem:[%s5 + $0x30] sm:$0xff]
    %v574 = vld [vmem:[%s5 + $0x38] sm:$0xff]
    %v575 = vsub.f32 %v567, %v559
    %v576 = vsub.f32 %v568, %v560
    %v577 = vsub.f32 %v569, %v561
    %v578 = vsub.f32 %v570, %v562
    %v579 = vsub.f32 %v571, %v563
    %v580 = vsub.f32 %v572, %v564
    %v581 = vsub.f32 %v573, %v565
    %v582 = vsub.f32 %v574, %v566
    %v583 = vld [vmem:[%s6] sm:$0xff]
    %v584 = vld [vmem:[%s6 + $0x8] sm:$0xff]
    %v585 = vld [vmem:[%s6 + $0x10] sm:$0xff]
    %v586 = vld [vmem:[%s6 + $0x18] sm:$0xff]
    %v587 = vld [vmem:[%s6 + $0x20] sm:$0xff]
    %v588 = vld [vmem:[%s6 + $0x28] sm:$0xff]
    %v589 = vld [vmem:[%s6 + $0x30] sm:$0xff]
    %v590 = vld [vmem:[%s6 + $0x38] sm:$0xff]
    %v591 = vmul.f32 %v583, %v575
    %v592 = vmul.f32 %v584, %v576
    %v593 = vmul.f32 %v585, %v577
    %v594 = vmul.f32 %v586, %v578
    %v595 = vmul.f32 %v587, %v579
    %v596 = vmul.f32 %v588, %v580
    %v597 = vmul.f32 %v589, %v581
    %v598 = vmul.f32 %v590, %v582
    %s599 = smul.f32 %s31, 0.25
    %v600 = vmul.f32 %v591, %v575
    %v601 = vmul.f32 %v592, %v576
    %v602 = vmul.f32 %v593, %v577
    %v603 = vmul.f32 %v594, %v578
    %v604 = vmul.f32 %v595, %v579
    %v605 = vmul.f32 %v596, %v580
    %v606 = vmul.f32 %v597, %v581
    %v607 = vmul.f32 %v598, %v582
    %v608 = vsel %vm486, %v600, 0.0
    %v609 = vsel %vm486, %v601, 0.0
    %v610 = vadd.f32 %v608, %v609
    %v611 = vsel %vm486, %v602, 0.0
    %v612 = vadd.f32 %v610, %v611
    %v613 = vsel %vm486, %v603, 0.0
    %v614 = vadd.f32 %v612, %v613
    %v615 = vsel %vm486, %v604, 0.0
    %v616 = vadd.f32 %v614, %v615
    %v617 = vsel %vm486, %v605, 0.0
    %v618 = vadd.f32 %v616, %v617
    %v619 = vsel %vm486, %v606, 0.0
    %v620 = vadd.f32 %v618, %v619
    %v621 = vsel %vm486, %v607, 0.0
    %v622 = vadd.f32 %v620, %v621
    %623 = vadd.xlane.f32.xlu0 %v622
    %v624 = vpop.xlane.xlu0 %623
    %v625 = vrot.slane %v624, 4
    %v626 = vadd.f32 %v624, %v625
    %v627 = vrot.slane %v626, 2
    %v628 = vadd.f32 %v626, %v627
    %v629 = vrot.slane %v628, 1
    %v630 = vadd.f32 %v628, %v629
    %s631 = vtos %v630
    %s632 = smul.f32 %s599, %s631
    %s633 = smul.f32 %s632, -1.0
    %s634 = scalar_lea.smem [#allocation4], 0
    %635 = sst [smem:[%s634]] %s633
    %v636 = vmul.f32 %v591, %v551
    %v637 = vmul.f32 %v592, %v552
    %v638 = vmul.f32 %v593, %v553
    %v639 = vmul.f32 %v594, %v554
    %v640 = vmul.f32 %v595, %v555
    %v641 = vmul.f32 %v596, %v556
    %v642 = vmul.f32 %v597, %v557
    %v643 = vmul.f32 %v598, %v558
    %v644 = vsel %vm486, %v636, 0.0
    %v645 = vsel %vm486, %v637, 0.0
    %v646 = vadd.f32 %v644, %v645
    %v647 = vsel %vm486, %v638, 0.0
    %v648 = vadd.f32 %v646, %v647
    %v649 = vsel %vm486, %v639, 0.0
    %v650 = vadd.f32 %v648, %v649
    %v651 = vsel %vm486, %v640, 0.0
    %v652 = vadd.f32 %v650, %v651
    %v653 = vsel %vm486, %v641, 0.0
    %v654 = vadd.f32 %v652, %v653
    %v655 = vsel %vm486, %v642, 0.0
    %v656 = vadd.f32 %v654, %v655
    %v657 = vsel %vm486, %v643, 0.0
    %v658 = vadd.f32 %v656, %v657
    %v659 = vrot.slane %v658, 4
    %v660 = vadd.f32 %v658, %v659
    %v661 = vrot.slane %v660, 2
    %v662 = vadd.f32 %v660, %v661
    %v663 = vrot.slane %v662, 1
    %v664 = vadd.f32 %v662, %v663
    %s665 = ssub.f32 0.0, %s31
    %v666 = vmul.f32 %v664, %v267
    %v667 = vsel %vm486, %v267, 0
    %669 = vmatprep.subr.mxu0 0.0
    %670 = vmatpush1.msra.mxu0 %v636
    %671 = vmatprep.subr.mxu0 0.0
    %672 = vmatpush1.msra.mxu0 %v637
    %673 = vmatprep.subr.mxu0 0.0
    %674 = vmatpush1.msra.mxu0 %v638
    %675 = vmatprep.subr.mxu0 0.0
    %676 = vmatpush1.msra.mxu0 %v639
    %677 = vmatprep.subr.mxu0 0.0
    %678 = vmatpush1.msra.mxu0 %v640
    %679 = vmatprep.subr.mxu0 0.0
    %680 = vmatpush1.msra.mxu0 %v641
    %681 = vmatprep.subr.mxu0 0.0
    %682 = vmatpush1.msra.mxu0 %v642
    %683 = vmatprep.subr.mxu0 0.0
    %684 = vmatpush1.msra.mxu0 %v643
    %685 = vmatprep.subr.mxu0 0.0
    %686 = vmatpush1.msra.mxu0 0.0
    %687 = vmatprep.subr.mxu0 0.0
    %688 = vmatpush1.msra.mxu0 0.0
    %689 = vmatprep.subr.mxu0 0.0
    %690 = vmatpush1.msra.mxu0 0.0
    %691 = vmatprep.subr.mxu0 0.0
    %692 = vmatpush1.msra.mxu0 0.0
    %693 = vmatprep.subr.mxu0 0.0
    %694 = vmatpush1.msra.mxu0 0.0
    %695 = vmatprep.subr.mxu0 0.0
    %696 = vmatpush1.msra.mxu0 0.0
    %697 = vmatprep.subr.mxu0 0.0
    %698 = vmatpush1.msra.mxu0 0.0
    %699 = vmatprep.subr.mxu0 0.0
    %700 = vmatpush1.msra.mxu0 0.0
    %701 = vmatprep.subr.mxu0 0.0
    %702 = vmatpush1.msra.mxu0 0.0
    %703 = vmatprep.subr.mxu0 0.0
    %704 = vmatpush1.msra.mxu0 0.0
    %705 = vmatprep.subr.mxu0 0.0
    %706 = vmatpush1.msra.mxu0 0.0
    %707 = vmatprep.subr.mxu0 0.0
    %708 = vmatpush1.msra.mxu0 0.0
    %709 = vmatprep.subr.mxu0 0.0
    %710 = vmatpush1.msra.mxu0 0.0
    %711 = vmatprep.subr.mxu0 0.0
    %712 = vmatpush1.msra.mxu0 0.0
    %713 = vmatprep.subr.mxu0 0.0
    %714 = vmatpush1.msra.mxu0 0.0
    %715 = vmatprep.subr.mxu0 0.0
    %716 = vmatpush1.msra.mxu0 0.0
    %717 = vmatprep.subr.mxu0 0.0
    %718 = vmatpush1.msra.mxu0 0.0
    %719 = vmatprep.subr.mxu0 0.0
    %720 = vmatpush1.msra.mxu0 0.0
    %721 = vmatprep.subr.mxu0 0.0
    %722 = vmatpush1.msra.mxu0 0.0
    %723 = vmatprep.subr.mxu0 0.0
    %724 = vmatpush1.msra.mxu0 0.0
    %725 = vmatprep.subr.mxu0 0.0
    %726 = vmatpush1.msra.mxu0 0.0
    %727 = vmatprep.subr.mxu0 0.0
    %728 = vmatpush1.msra.mxu0 0.0
    %729 = vmatprep.subr.mxu0 0.0
    %730 = vmatpush1.msra.mxu0 0.0
    %731 = vmatprep.subr.mxu0 0.0
    %732 = vmatpush1.msra.mxu0 0.0
    %733 = vmatprep.mubr.f32.mxu0 0.0
    %734 = vmatmul.mubr.f32.gmra.mrb[0].mxu0 %v667
    %v735 = vpop.f32.mrb[0].mxu0
    %v736 = vadd.f32 0.0, %v735
    %v737 = vpop.f32.mrb[0].mxu0
    %738 = vdwg.mxu0
    %v739 = vsub.f32 %v666, %v736
    %v740 = vstv %s665
    %v741 = vmul.f32 %v740, %v739
    %v742 = vld [vmem:[%s3] sm:$0xff]
    %v743 = vld [vmem:[%s3 + $0x8] sm:$0xff]
    %v744 = vld [vmem:[%s3 + $0x10] sm:$0xff]
    %v745 = vld [vmem:[%s3 + $0x18] sm:$0xff]
    %v746 = vld [vmem:[%s3 + $0x20] sm:$0xff]
    %v747 = vld [vmem:[%s3 + $0x28] sm:$0xff]
    %v748 = vld [vmem:[%s3 + $0x30] sm:$0xff]
    %v749 = vld [vmem:[%s3 + $0x38] sm:$0xff]
    %s750 = scalar_lea.vmem %s3, 64
    %v751 = vld [vmem:[%s750] sm:$0xff]
    %v752 = vld [vmem:[%s750 + $0x8] sm:$0xff]
    %v753 = vld [vmem:[%s750 + $0x10] sm:$0xff]
    %v754 = vld [vmem:[%s750 + $0x18] sm:$0xff]
    %v755 = vld [vmem:[%s750 + $0x20] sm:$0xff]
    %v756 = vld [vmem:[%s750 + $0x28] sm:$0xff]
    %v757 = vld [vmem:[%s750 + $0x30] sm:$0xff]
    %v758 = vld [vmem:[%s750 + $0x38] sm:$0xff]
    %v760 = vrot.slane %v741, 1
    %v761 = vsel %vm486, %v760, 0
    %763 = vmatprep.subr.mxu0 0.0
    %764 = vmatpush1.msra.mxu0 %v751
    %765 = vmatprep.subr.mxu0 0.0
    %766 = vmatpush1.msra.mxu0 %v752
    %767 = vmatprep.subr.mxu0 0.0
    %768 = vmatpush1.msra.mxu0 %v753
    %769 = vmatprep.subr.mxu0 0.0
    %770 = vmatpush1.msra.mxu0 %v754
    %771 = vmatprep.subr.mxu0 0.0
    %772 = vmatpush1.msra.mxu0 %v755
    %773 = vmatprep.subr.mxu0 0.0
    %774 = vmatpush1.msra.mxu0 %v756
    %775 = vmatprep.subr.mxu0 0.0
    %776 = vmatpush1.msra.mxu0 %v757
    %777 = vmatprep.subr.mxu0 0.0
    %778 = vmatpush1.msra.mxu0 %v758
    %779 = vmatprep.subr.mxu0 0.0
    %780 = vmatpush1.msra.mxu0 0.0
    %781 = vmatprep.subr.mxu0 0.0
    %782 = vmatpush1.msra.mxu0 0.0
    %783 = vmatprep.subr.mxu0 0.0
    %784 = vmatpush1.msra.mxu0 0.0
    %785 = vmatprep.subr.mxu0 0.0
    %786 = vmatpush1.msra.mxu0 0.0
    %787 = vmatprep.subr.mxu0 0.0
    %788 = vmatpush1.msra.mxu0 0.0
    %789 = vmatprep.subr.mxu0 0.0
    %790 = vmatpush1.msra.mxu0 0.0
    %791 = vmatprep.subr.mxu0 0.0
    %792 = vmatpush1.msra.mxu0 0.0
    %793 = vmatprep.subr.mxu0 0.0
    %794 = vmatpush1.msra.mxu0 0.0
    %795 = vmatprep.subr.mxu0 0.0
    %796 = vmatpush1.msra.mxu0 0.0
    %797 = vmatprep.subr.mxu0 0.0
    %798 = vmatpush1.msra.mxu0 0.0
    %799 = vmatprep.subr.mxu0 0.0
    %800 = vmatpush1.msra.mxu0 0.0
    %801 = vmatprep.subr.mxu0 0.0
    %802 = vmatpush1.msra.mxu0 0.0
    %803 = vmatprep.subr.mxu0 0.0
    %804 = vmatpush1.msra.mxu0 0.0
    %805 = vmatprep.subr.mxu0 0.0
    %806 = vmatpush1.msra.mxu0 0.0
    %807 = vmatprep.subr.mxu0 0.0
    %808 = vmatpush1.msra.mxu0 0.0
    %809 = vmatprep.subr.mxu0 0.0
    %810 = vmatpush1.msra.mxu0 0.0
    %811 = vmatprep.subr.mxu0 0.0
    %812 = vmatpush1.msra.mxu0 0.0
    %813 = vmatprep.subr.mxu0 0.0
    %814 = vmatpush1.msra.mxu0 0.0
    %815 = vmatprep.subr.mxu0 0.0
    %816 = vmatpush1.msra.mxu0 0.0
    %817 = vmatprep.subr.mxu0 0.0
    %818 = vmatpush1.msra.mxu0 0.0
    %819 = vmatprep.subr.mxu0 0.0
    %820 = vmatpush1.msra.mxu0 0.0
    %821 = vmatprep.subr.mxu0 0.0
    %822 = vmatpush1.msra.mxu0 0.0
    %823 = vmatprep.subr.mxu0 0.0
    %824 = vmatpush1.msra.mxu0 0.0
    %825 = vmatprep.subr.mxu0 0.0
    %826 = vmatpush1.msra.mxu0 0.0
    %827 = vmatprep.mubr.f32.mxu0 0.0
    %828 = vmatmul.mubr.f32.gmra.mrb[0].mxu0 %v761
    %v829 = vpop.f32.mrb[0].mxu0
    %v830 = vadd.f32 0.0, %v829
    %v831 = vpop.f32.mrb[0].mxu0
    %832 = vdwg.mxu0
    %v833 = vsel %vm486, %v741, 0
    %835 = vmatprep.subr.mxu0 0.0
    %836 = vmatpush1.msra.mxu0 %v742
    %837 = vmatprep.subr.mxu0 0.0
    %838 = vmatpush1.msra.mxu0 %v743
    %839 = vmatprep.subr.mxu0 0.0
    %840 = vmatpush1.msra.mxu0 %v744
    %841 = vmatprep.subr.mxu0 0.0
    %842 = vmatpush1.msra.mxu0 %v745
    %843 = vmatprep.subr.mxu0 0.0
    %844 = vmatpush1.msra.mxu0 %v746
    %845 = vmatprep.subr.mxu0 0.0
    %846 = vmatpush1.msra.mxu0 %v747
    %847 = vmatprep.subr.mxu0 0.0
    %848 = vmatpush1.msra.mxu0 %v748
    %849 = vmatprep.subr.mxu0 0.0
    %850 = vmatpush1.msra.mxu0 %v749
    %851 = vmatprep.subr.mxu0 0.0
    %852 = vmatpush1.msra.mxu0 0.0
    %853 = vmatprep.subr.mxu0 0.0
    %854 = vmatpush1.msra.mxu0 0.0
    %855 = vmatprep.subr.mxu0 0.0
    %856 = vmatpush1.msra.mxu0 0.0
    %857 = vmatprep.subr.mxu0 0.0
    %858 = vmatpush1.msra.mxu0 0.0
    %859 = vmatprep.subr.mxu0 0.0
    %860 = vmatpush1.msra.mxu0 0.0
    %861 = vmatprep.subr.mxu0 0.0
    %862 = vmatpush1.msra.mxu0 0.0
    %863 = vmatprep.subr.mxu0 0.0
    %864 = vmatpush1.msra.mxu0 0.0
    %865 = vmatprep.subr.mxu0 0.0
    %866 = vmatpush1.msra.mxu0 0.0
    %867 = vmatprep.subr.mxu0 0.0
    %868 = vmatpush1.msra.mxu0 0.0
    %869 = vmatprep.subr.mxu0 0.0
    %870 = vmatpush1.msra.mxu0 0.0
    %871 = vmatprep.subr.mxu0 0.0
    %872 = vmatpush1.msra.mxu0 0.0
    %873 = vmatprep.subr.mxu0 0.0
    %874 = vmatpush1.msra.mxu0 0.0
    %875 = vmatprep.subr.mxu0 0.0
    %876 = vmatpush1.msra.mxu0 0.0
    %877 = vmatprep.subr.mxu0 0.0
    %878 = vmatpush1.msra.mxu0 0.0
    %879 = vmatprep.subr.mxu0 0.0
    %880 = vmatpush1.msra.mxu0 0.0
    %881 = vmatprep.subr.mxu0 0.0
    %882 = vmatpush1.msra.mxu0 0.0
    %883 = vmatprep.subr.mxu0 0.0
    %884 = vmatpush1.msra.mxu0 0.0
    %885 = vmatprep.subr.mxu0 0.0
    %886 = vmatpush1.msra.mxu0 0.0
    %887 = vmatprep.subr.mxu0 0.0
    %888 = vmatpush1.msra.mxu0 0.0
    %889 = vmatprep.subr.mxu0 0.0
    %890 = vmatpush1.msra.mxu0 0.0
    %891 = vmatprep.subr.mxu0 0.0
    %892 = vmatpush1.msra.mxu0 0.0
    %893 = vmatprep.subr.mxu0 0.0
    %894 = vmatpush1.msra.mxu0 0.0
    %895 = vmatprep.subr.mxu0 0.0
    %896 = vmatpush1.msra.mxu0 0.0
    %897 = vmatprep.subr.mxu0 0.0
    %898 = vmatpush1.msra.mxu0 0.0
    %899 = vmatprep.mubr.f32.mxu0 0.0
    %900 = vmatmul.mubr.f32.gmra.mrb[0].mxu0 %v833
    %v901 = vpop.f32.mrb[0].mxu0
    %v902 = vadd.f32 %v830, %v901
    %v903 = vpop.f32.mrb[0].mxu0
    %904 = vdwg.mxu0
    %s905 = scalar_lea.vmem %s3, 128
    %v906 = vld [vmem:[%s905] sm:$0xff]
    %v907 = vld [vmem:[%s905 + $0x8] sm:$0xff]
    %v908 = vld [vmem:[%s905 + $0x10] sm:$0xff]
    %v909 = vld [vmem:[%s905 + $0x18] sm:$0xff]
    %v910 = vld [vmem:[%s905 + $0x20] sm:$0xff]
    %v911 = vld [vmem:[%s905 + $0x28] sm:$0xff]
    %v912 = vld [vmem:[%s905 + $0x30] sm:$0xff]
    %v913 = vld [vmem:[%s905 + $0x38] sm:$0xff]
    %v914 = vrot.slane %v741, 2
    %v915 = vsel %vm486, %v914, 0
    %917 = vmatprep.subr.mxu0 0.0
    %918 = vmatpush1.msra.mxu0 %v906
    %919 = vmatprep.subr.mxu0 0.0
    %920 = vmatpush1.msra.mxu0 %v907
    %921 = vmatprep.subr.mxu0 0.0
    %922 = vmatpush1.msra.mxu0 %v908
    %923 = vmatprep.subr.mxu0 0.0
    %924 = vmatpush1.msra.mxu0 %v909
    %925 = vmatprep.subr.mxu0 0.0
    %926 = vmatpush1.msra.mxu0 %v910
    %927 = vmatprep.subr.mxu0 0.0
    %928 = vmatpush1.msra.mxu0 %v911
    %929 = vmatprep.subr.mxu0 0.0
    %930 = vmatpush1.msra.mxu0 %v912
    %931 = vmatprep.subr.mxu0 0.0
    %932 = vmatpush1.msra.mxu0 %v913
    %933 = vmatprep.subr.mxu0 0.0
    %934 = vmatpush1.msra.mxu0 0.0
    %935 = vmatprep.subr.mxu0 0.0
    %936 = vmatpush1.msra.mxu0 0.0
    %937 = vmatprep.subr.mxu0 0.0
    %938 = vmatpush1.msra.mxu0 0.0
    %939 = vmatprep.subr.mxu0 0.0
    %940 = vmatpush1.msra.mxu0 0.0
    %941 = vmatprep.subr.mxu0 0.0
    %942 = vmatpush1.msra.mxu0 0.0
    %943 = vmatprep.subr.mxu0 0.0
    %944 = vmatpush1.msra.mxu0 0.0
    %945 = vmatprep.subr.mxu0 0.0
    %946 = vmatpush1.msra.mxu0 0.0
    %947 = vmatprep.subr.mxu0 0.0
    %948 = vmatpush1.msra.mxu0 0.0
    %949 = vmatprep.subr.mxu0 0.0
    %950 = vmatpush1.msra.mxu0 0.0
    %951 = vmatprep.subr.mxu0 0.0
    %952 = vmatpush1.msra.mxu0 0.0
    %953 = vmatprep.subr.mxu0 0.0
    %954 = vmatpush1.msra.mxu0 0.0
    %955 = vmatprep.subr.mxu0 0.0
    %956 = vmatpush1.msra.mxu0 0.0
    %957 = vmatprep.subr.mxu0 0.0
    %958 = vmatpush1.msra.mxu0 0.0
    %959 = vmatprep.subr.mxu0 0.0
    %960 = vmatpush1.msra.mxu0 0.0
    %961 = vmatprep.subr.mxu0 0.0
    %962 = vmatpush1.msra.mxu0 0.0
    %963 = vmatprep.subr.mxu0 0.0
    %964 = vmatpush1.msra.mxu0 0.0
    %965 = vmatprep.subr.mxu0 0.0
    %966 = vmatpush1.msra.mxu0 0.0
    %967 = vmatprep.subr.mxu0 0.0
    %968 = vmatpush1.msra.mxu0 0.0
    %969 = vmatprep.subr.mxu0 0.0
    %970 = vmatpush1.msra.mxu0 0.0
    %971 = vmatprep.subr.mxu0 0.0
    %972 = vmatpush1.msra.mxu0 0.0
    %973 = vmatprep.subr.mxu0 0.0
    %974 = vmatpush1.msra.mxu0 0.0
    %975 = vmatprep.subr.mxu0 0.0
    %976 = vmatpush1.msra.mxu0 0.0
    %977 = vmatprep.subr.mxu0 0.0
    %978 = vmatpush1.msra.mxu0 0.0
    %979 = vmatprep.subr.mxu0 0.0
    %980 = vmatpush1.msra.mxu0 0.0
    %981 = vmatprep.mubr.f32.mxu0 0.0
    %982 = vmatmul.mubr.f32.gmra.mrb[0].mxu0 %v915
    %v983 = vpop.f32.mrb[0].mxu0
    %v984 = vadd.f32 0.0, %v983
    %v985 = vpop.f32.mrb[0].mxu0
    %986 = vdwg.mxu0
    %v987 = vadd.f32 %v902, %v984
    %vm988 = vcmask 253952
    %989 = vst.msk [vmem:[#allocation7] sm:$0x1] %vm988, %v987
    // Predicated region
    $region30: #{tpu_custom_call.1} parent=1 // pred_check
      _
    $region31: #{tpu_custom_call.1} parent=1 // pred_check_branch
      %991 = sbr.rel (0) target = $region33
    $region32: #{tpu_custom_call.1} parent=1 // pred_region
      %s993 = ssub.s32 16, 16
      %994 = vsyncadd [#allocation6], %s993
      %997 = dma.smem_to_hbm [#allocation4], 16, %s7, [#allocation6]
    $region33: #{tpu_custom_call.1} parent=1 // pred_fallthru
      _
    // Predicated region
    $region34: #{tpu_custom_call.1} parent=1 // pred_check
      _
    $region35: #{tpu_custom_call.1} parent=1 // pred_check_branch
      %999 = sbr.rel (0) target = $region37
    $region36: #{tpu_custom_call.1} parent=1 // pred_region
      %s1001 = ssub.s32 16, 16
      %1002 = vsyncadd [#allocation5], %s1001
      %s1004 = sshll.u32 [#allocation7], 4
      %s1005 = int_to_ptr.vmem [resolvable:$true] %s1004
      %1007 = dma.vmem_to_hbm [thread:$0]  %s1005, 16, %s8, [#allocation5]
    $region37: #{tpu_custom_call.1} parent=1 // pred_fallthru
      _
    // Predicated region
    $region38: #{tpu_custom_call.1} parent=1 // pred_check
      _
    $region39: #{tpu_custom_call.1} parent=1 // pred_check_branch
      %1009 = sbr.rel (0) target = $region41
    $region40: #{tpu_custom_call.1} parent=1 // pred_region
      %1010 = dma.done [#allocation6], 16
    $region41: #{tpu_custom_call.1} parent=1 // pred_fallthru
      _
    // Predicated region
    $region42: #{tpu_custom_call.1} parent=1 // pred_check
      _
    $region43: #{tpu_custom_call.1} parent=1 // pred_check_branch
      %1012 = sbr.rel (0) target = $region45
    $region44: #{tpu_custom_call.1} parent=1 // pred_region
      %1013 = dma.done [#allocation5], 16
    $region45: #{tpu_custom_call.1} parent=1 // pred_fallthru
      _
    %1014 = sfence
    %1015 = vsyncpa [#allocation5], 1
    %1016 = vsyncpa [#allocation6], 1

</llo_original>
